<compile_context>
chip_gen: v7x
topology: tpu7x:2x2x1
jax: 0.10.0
libtpu: 0.0.40
codegen_flags: <defaults>
</compile_context>

<pallas_src>
import functools

import jax
import jax.numpy as jnp
from jax import lax
from jax.experimental import pallas as pl
from jax.experimental.pallas import tpu as pltpu

# ---------------- model dimensions (small, TPU-friendly) ----------------
B = 2      # batch
S = 8      # sequence length
V = 128    # vocab size (synthetic)
H = 128    # encoder hidden size
P = 128    # projection_dim


# ======================= fused Pallas kernel ==============================
def fused_sim_kernel(seq_len,
                     t_ids_ref, l_ids_ref,
                     emb_bd_ref, wpT_bd_ref, bp_bd_ref,
                     wprojT_bd_ref, bproj_bd_ref,
                     out_ref):
    """Both encoder sides + projection + cosine similarity in one body.

    Text and label activations live side-by-side on the lane axis (B, 2H);
    the encoder weights are block-diagonal so each stage is one wide matmul.
    """
    vocab = emb_bd_ref.shape[0] // 2
    hidden = wpT_bd_ref.shape[0] // 2
    proj_dim = wprojT_bd_ref.shape[1] // 2

    def pooled_onehot(ids_ref):
        ids = ids_ref[...]                                   # (B*S, 1) int32
        bs = ids.shape[0]
        b = bs // seq_len
        v_iota = lax.broadcasted_iota(jnp.int32, (bs, vocab), 1)
        # Masked positions carry the out-of-range sentinel id (== vocab), so
        # their one-hot row is all zeros; no separate mask input needed.
        onehot = jnp.where(v_iota == ids, 1.0, 0.0).astype(jnp.float32)
        # Pooling without a matmul: static sublane-aligned slice sums
        # (seq_len == 8) handled by the VPU/XLU while the MXU chain runs.
        pooled = jnp.concatenate(
            [jnp.sum(onehot[i * seq_len:(i + 1) * seq_len, :],
                     axis=0, keepdims=True) for i in range(b)],
            axis=0)                                          # (B, V)
        counts = jnp.sum(pooled, axis=1, keepdims=True)      # (B, 1)
        return pooled, counts

    po_t, cnt_t = pooled_onehot(t_ids_ref)
    po_l, cnt_l = pooled_onehot(l_ids_ref)
    b = po_t.shape[0]

    # --- text|label fused on lanes; block-diag embedding matmul (bf16->f32).
    po_bd = jnp.concatenate([po_t, po_l], axis=1)            # (B, 2V) f32
    pooled_sum = jnp.dot(po_bd.astype(jnp.bfloat16), emb_bd_ref[...],
                         preferred_element_type=jnp.float32)  # (B, 2H) f32

    # Per-side mean: first H lanes divided by text count, last H by label.
    lane = lax.broadcasted_iota(jnp.int32, (b, 2 * hidden), 1)
    cnt_bd = jnp.where(lane < hidden,
                       jnp.maximum(cnt_t, 1e-9),
                       jnp.maximum(cnt_l, 1e-9))
    pooled = pooled_sum / cnt_bd                              # (B, 2H) f32

    # --- BERT-style pooler head (block-diag weights, bf16 operands).
    pooler = jnp.tanh(
        jnp.dot(pooled.astype(jnp.bfloat16), wpT_bd_ref[...],
                preferred_element_type=jnp.float32) + bp_bd_ref[...])

    # --- projection Linear (block-diag).
    proj = (jnp.dot(pooler.astype(jnp.bfloat16), wprojT_bd_ref[...],
                    preferred_element_type=jnp.float32)
            + bproj_bd_ref[...])                              # (B, 2P) f32
    t_proj = proj[:, :proj_dim]
    l_proj = proj[:, proj_dim:]

    # --- cosine epilogue: ONE (1,P) x (3B,P)^T contraction -> (1, 3B).
    stacked = jnp.concatenate([t_proj * l_proj,
                               t_proj * t_proj,
                               l_proj * l_proj], axis=0)       # (3B, P)
    ones_p = jnp.ones((1, proj_dim), jnp.float32)
    red = lax.dot_general(ones_p, stacked, (((1,), (1,)), ((), ())),
                          preferred_element_type=jnp.float32)  # (1, 3B)

    eps = 1e-8
    dot_r = red[:, 0:b]
    nt2_r = red[:, b:2 * b]
    nl2_r = red[:, 2 * b:3 * b]
    # rsqrt(max(n2, eps^2)) == 1/max(sqrt(n2), eps) -> PyTorch eps semantics.
    inv = (lax.rsqrt(jnp.maximum(nt2_r, eps * eps))
           * lax.rsqrt(jnp.maximum(nl2_r, eps * eps)))
    cos = dot_r * inv                                          # (1, B)

    # Lane-dense store: cosine values in lanes 0..B-1, zeros elsewhere.
    lanes = out_ref.shape[1]
    out_ref[...] = jnp.concatenate(
        [cos, jnp.zeros((1, lanes - b), jnp.float32)],
        axis=1).astype(out_ref.dtype)


# ======================= wrapper ==========================================
_vmem = pl.BlockSpec(memory_space=pltpu.MemorySpace.VMEM)


@jax.jit
def text_label_sim_forward(text_ids, text_mask, label_ids, label_mask,
                           text_params, label_params):
    b, s = text_ids.shape
    vocab = text_params[0].shape[0]

    def prep_ids(ids, mask):
        # Fold the attention mask into the ids: masked positions get the
        # out-of-range sentinel `vocab` -> zero one-hot row in the kernel.
        folded = jnp.where(mask > 0.5, ids.astype(jnp.int32), vocab)
        return folded.reshape(b * s, 1)

    def block_diag(a, c):
        top = jnp.concatenate(
            [a, jnp.zeros((a.shape[0], c.shape[1]), a.dtype)], axis=1)
        bot = jnp.concatenate(
            [jnp.zeros((c.shape[0], a.shape[1]), c.dtype), c], axis=1)
        return jnp.concatenate([top, bot], axis=0)

    emb_t, wp_t, bp_t, wproj_t, bproj_t = text_params
    emb_l, wp_l, bp_l, wproj_l, bproj_l = label_params

    # Block-diagonal fused weights (pre-transposed once, stored bf16 for the
    # MXU); biases stay f32 and are simply concatenated along the lane axis.
    emb_bd = block_diag(emb_t.astype(jnp.float32),
                        emb_l.astype(jnp.float32)).astype(jnp.bfloat16)
    wpT_bd = block_diag(wp_t.T.astype(jnp.float32),
                        wp_l.T.astype(jnp.float32)).astype(jnp.bfloat16)
    bp_bd = jnp.concatenate([bp_t, bp_l]).reshape(1, -1).astype(jnp.float32)
    wprojT_bd = block_diag(wproj_t.T.astype(jnp.float32),
                           wproj_l.T.astype(jnp.float32)).astype(jnp.bfloat16)
    bproj_bd = jnp.concatenate([bproj_t, bproj_l]
                               ).reshape(1, -1).astype(jnp.float32)

    t_ids = prep_ids(text_ids, text_mask)
    l_ids = prep_ids(label_ids, label_mask)

    kernel = functools.partial(fused_sim_kernel, s)
    out = pl.pallas_call(
        kernel,
        out_shape=jax.ShapeDtypeStruct((1, 128), jnp.float32),
        in_specs=[_vmem] * 7,
        out_specs=_vmem,
    )(t_ids, l_ids, emb_bd, wpT_bd, bp_bd, wprojT_bd, bproj_bd)
    return out[0, :b]                                   # (B,)


# ======================= reference (pure JAX) =============================
def reference_forward(text_ids, text_mask, label_ids, label_mask,
                      text_params, label_params,
                      matmul_dtype=jnp.float32):
    """Pure-JAX reference.  matmul_dtype=bf16 mirrors the kernel's MXU
    operand precision (f32 accumulation) for a tight numerical check."""
    def enc(ids, mask, params):
        emb, wp, bp, wproj, bproj = params
        h = emb.astype(matmul_dtype)[ids].astype(jnp.float32)   # (B, S, H)
        m = mask[..., None].astype(jnp.float32)
        pooled = (h * m).sum(1) / jnp.maximum(m.sum(1), 1e-9)
        pooler = jnp.tanh(
            jnp.dot(pooled.astype(matmul_dtype), wp.T.astype(matmul_dtype),
                    preferred_element_type=jnp.float32) + bp)
        return (jnp.dot(pooler.astype(matmul_dtype),
                        wproj.T.astype(matmul_dtype),
                        preferred_element_type=jnp.float32) + bproj)

    t = enc(text_ids, text_mask, text_params)
    l = enc(label_ids, label_mask, label_params)
    dot = (t * l).sum(1)
    nt = jnp.sqrt((t * t).sum(1))
    nl = jnp.sqrt((l * l).sum(1))
    eps = 1e-8
    return dot / (jnp.maximum(nt, eps) * jnp.maximum(nl, eps))


# ======================= param / input construction ======================
def make_params(key):
    k = jax.random.split(key, 5)
    emb = jax.random.normal(k[0], (V, H), jnp.float32) * 0.02
    wp = jax.random.normal(k[1], (H, H), jnp.float32) * 0.02
    bp = jax.random.normal(k[2], (H,), jnp.float32) * 0.02
    wproj = jax.random.normal(k[3], (P, H), jnp.float32) * 0.02
    bproj = jax.random.normal(k[4], (P,), jnp.float32) * 0.02
    return (emb, wp, bp, wproj, bproj)


if __name__ == "__main__":
    root = jax.random.PRNGKey(0)
    k_txt, k_lbl, k_tid, k_lid = jax.random.split(root, 4)

    text_params = make_params(k_txt)
    label_params = make_params(k_lbl)

    text_ids = jax.random.randint(k_tid, (B, S), 0, V, dtype=jnp.int32)
    label_ids = jax.random.randint(k_lid, (B, S), 0, V, dtype=jnp.int32)
    # attention masks: all-ones with some trailing padding on row 1
    text_mask = jnp.ones((B, S), jnp.float32).at[1, S - 2:].set(0.0)
    label_mask = jnp.ones((B, S), jnp.float32).at[1, S - 3:].set(0.0)

    sim = text_label_sim_forward(text_ids, text_mask, label_ids, label_mask,
                                 text_params, label_params)
    sim = jax.block_until_ready(sim)

    ref_bf16 = reference_forward(text_ids, text_mask, label_ids, label_mask,
                                 text_params, label_params,
                                 matmul_dtype=jnp.bfloat16)
    ref_f32 = reference_forward(text_ids, text_mask, label_ids, label_mask,
                                text_params, label_params,
                                matmul_dtype=jnp.float32)

    assert sim.shape == (B,)
    # Tight check against the bf16-operand-matched reference ...
    assert jnp.allclose(sim, ref_bf16, atol=2e-3, rtol=2e-3), (sim, ref_bf16)
    # ... and a looser sanity check against the full-f32 reference.
    assert jnp.allclose(sim, ref_f32, atol=2e-2, rtol=2e-2), (sim, ref_f32)

    print("KERNEL_OK")
</pallas_src>

<mosaic_0001>
module attributes {stable_mosaic.version = 11 : i64} {
  func.func @fused_sim_kernel(%arg0: memref<16x1xi32, #tpu.memory_space<vmem>>, %arg1: memref<16x1xi32, #tpu.memory_space<vmem>>, %arg2: memref<256x256xbf16, #tpu.memory_space<vmem>>, %arg3: memref<256x256xbf16, #tpu.memory_space<vmem>>, %arg4: memref<1x256xf32, #tpu.memory_space<vmem>>, %arg5: memref<256x256xbf16, #tpu.memory_space<vmem>>, %arg6: memref<1x256xf32, #tpu.memory_space<vmem>>, %arg7: memref<1x128xf32, #tpu.memory_space<vmem>>) attributes {dimension_semantics = [], scalar_prefetch = 0 : i64, scratch_operands = 0 : i64, tpu.core_type = #tpu.core_type<tc>} {
    %c0 = arith.constant 0 : index
    %c0_0 = arith.constant 0 : index
    %0 = vector.load %arg0[%c0, %c0_0] : memref<16x1xi32, #tpu.memory_space<vmem>>, vector<16x1xi32>
    %1 = tpu.iota {dimensions = array<i32: 1>} : vector<16x128xi32>
    %2 = vector.broadcast %0 : vector<16x1xi32> to vector<16x128xi32>
    %3 = arith.cmpi eq, %1, %2 : vector<16x128xi32>
    %cst = arith.constant 1.000000e+00 : f32
    %cst_1 = arith.constant 0.000000e+00 : f32
    %4 = vector.broadcast %cst : f32 to vector<16x128xf32>
    %5 = vector.broadcast %cst_1 : f32 to vector<16x128xf32>
    %6 = arith.select %3, %4, %5 : vector<16x128xi1>, vector<16x128xf32>
    %7 = vector.extract_strided_slice %6 {offsets = [0, 0], sizes = [8, 128], strides = [1, 1]} : vector<16x128xf32> to vector<8x128xf32>
    %cst_2 = arith.constant dense<0.000000e+00> : vector<128xf32>
    %8 = vector.multi_reduction <add>, %7, %cst_2 [0] : vector<8x128xf32> to vector<128xf32>
    %9 = vector.shape_cast %8 : vector<128xf32> to vector<1x128xf32>
    %10 = vector.extract_strided_slice %6 {offsets = [8, 0], sizes = [8, 128], strides = [1, 1]} : vector<16x128xf32> to vector<8x128xf32>
    %cst_3 = arith.constant dense<0.000000e+00> : vector<128xf32>
    %11 = vector.multi_reduction <add>, %10, %cst_3 [0] : vector<8x128xf32> to vector<128xf32>
    %12 = vector.shape_cast %11 : vector<128xf32> to vector<1x128xf32>
    %13 = tpu.concatenate %9, %12 in 0 : vector<1x128xf32>, vector<1x128xf32> -> vector<2x128xf32>
    %cst_4 = arith.constant dense<0.000000e+00> : vector<2xf32>
    %14 = vector.multi_reduction <add>, %13, %cst_4 [1] : vector<2x128xf32> to vector<2xf32>
    %15 = vector.shape_cast %14 : vector<2xf32> to vector<2x1xf32>
    %c0_5 = arith.constant 0 : index
    %c0_6 = arith.constant 0 : index
    %16 = vector.load %arg1[%c0_5, %c0_6] : memref<16x1xi32, #tpu.memory_space<vmem>>, vector<16x1xi32>
    %17 = tpu.iota {dimensions = array<i32: 1>} : vector<16x128xi32>
    %18 = vector.broadcast %16 : vector<16x1xi32> to vector<16x128xi32>
    %19 = arith.cmpi eq, %17, %18 : vector<16x128xi32>
    %cst_7 = arith.constant 1.000000e+00 : f32
    %cst_8 = arith.constant 0.000000e+00 : f32
    %20 = vector.broadcast %cst_7 : f32 to vector<16x128xf32>
    %21 = vector.broadcast %cst_8 : f32 to vector<16x128xf32>
    %22 = arith.select %19, %20, %21 : vector<16x128xi1>, vector<16x128xf32>
    %23 = vector.extract_strided_slice %22 {offsets = [0, 0], sizes = [8, 128], strides = [1, 1]} : vector<16x128xf32> to vector<8x128xf32>
    %cst_9 = arith.constant dense<0.000000e+00> : vector<128xf32>
    %24 = vector.multi_reduction <add>, %23, %cst_9 [0] : vector<8x128xf32> to vector<128xf32>
    %25 = vector.shape_cast %24 : vector<128xf32> to vector<1x128xf32>
    %26 = vector.extract_strided_slice %22 {offsets = [8, 0], sizes = [8, 128], strides = [1, 1]} : vector<16x128xf32> to vector<8x128xf32>
    %cst_10 = arith.constant dense<0.000000e+00> : vector<128xf32>
    %27 = vector.multi_reduction <add>, %26, %cst_10 [0] : vector<8x128xf32> to vector<128xf32>
    %28 = vector.shape_cast %27 : vector<128xf32> to vector<1x128xf32>
    %29 = tpu.concatenate %25, %28 in 0 : vector<1x128xf32>, vector<1x128xf32> -> vector<2x128xf32>
    %cst_11 = arith.constant dense<0.000000e+00> : vector<2xf32>
    %30 = vector.multi_reduction <add>, %29, %cst_11 [1] : vector<2x128xf32> to vector<2xf32>
    %31 = vector.shape_cast %30 : vector<2xf32> to vector<2x1xf32>
    %32 = tpu.concatenate %13, %29 in 1 : vector<2x128xf32>, vector<2x128xf32> -> vector<2x256xf32>
    %33 = arith.truncf %32 : vector<2x256xf32> to vector<2x256xbf16>
    %c0_12 = arith.constant 0 : index
    %c0_13 = arith.constant 0 : index
    %34 = vector.load %arg2[%c0_12, %c0_13] : memref<256x256xbf16, #tpu.memory_space<vmem>>, vector<256x256xbf16>
    %cst_14 = arith.constant dense<0.000000e+00> : vector<2x256xf32>
    %35 = tpu.matmul %33, %34, %cst_14 {dimension_numbers = #tpu.dot_dimension_numbers<[1], [0], [0], [1], [0, 0, 1, 1], [], []>} : vector<2x256xbf16>, vector<256x256xbf16>, vector<2x256xf32> -> vector<2x256xf32>
    %36 = tpu.iota {dimensions = array<i32: 1>} : vector<2x256xi32>
    %c128_i32 = arith.constant 128 : i32
    %37 = vector.broadcast %c128_i32 : i32 to vector<2x256xi32>
    %38 = arith.cmpi slt, %36, %37 : vector<2x256xi32>
    %cst_15 = arith.constant 9.99999971E-10 : f32
    %39 = vector.broadcast %cst_15 : f32 to vector<2x1xf32>
    %40 = arith.maximumf %15, %39 : vector<2x1xf32>
    %cst_16 = arith.constant 9.99999971E-10 : f32
    %41 = vector.broadcast %cst_16 : f32 to vector<2x1xf32>
    %42 = arith.maximumf %31, %41 : vector<2x1xf32>
    %43 = vector.shape_cast %40 : vector<2x1xf32> to vector<2x1xf32>
    %44 = vector.broadcast %43 : vector<2x1xf32> to vector<2x256xf32>
    %45 = vector.shape_cast %42 : vector<2x1xf32> to vector<2x1xf32>
    %46 = vector.broadcast %45 : vector<2x1xf32> to vector<2x256xf32>
    %47 = arith.select %38, %44, %46 : vector<2x256xi1>, vector<2x256xf32>
    %48 = arith.divf %35, %47 : vector<2x256xf32>
    %49 = arith.truncf %48 : vector<2x256xf32> to vector<2x256xbf16>
    %c0_17 = arith.constant 0 : index
    %c0_18 = arith.constant 0 : index
    %50 = vector.load %arg3[%c0_17, %c0_18] : memref<256x256xbf16, #tpu.memory_space<vmem>>, vector<256x256xbf16>
    %cst_19 = arith.constant dense<0.000000e+00> : vector<2x256xf32>
    %51 = tpu.matmul %49, %50, %cst_19 {dimension_numbers = #tpu.dot_dimension_numbers<[1], [0], [0], [1], [0, 0, 1, 1], [], []>} : vector<2x256xbf16>, vector<256x256xbf16>, vector<2x256xf32> -> vector<2x256xf32>
    %c0_20 = arith.constant 0 : index
    %c0_21 = arith.constant 0 : index
    %52 = vector.load %arg4[%c0_20, %c0_21] : memref<1x256xf32, #tpu.memory_space<vmem>>, vector<1x256xf32>
    %53 = vector.broadcast %52 : vector<1x256xf32> to vector<2x256xf32>
    %54 = arith.addf %51, %53 : vector<2x256xf32>
    %55 = math.tanh %54 : vector<2x256xf32>
    %56 = arith.truncf %55 : vector<2x256xf32> to vector<2x256xbf16>
    %c0_22 = arith.constant 0 : index
    %c0_23 = arith.constant 0 : index
    %57 = vector.load %arg5[%c0_22, %c0_23] : memref<256x256xbf16, #tpu.memory_space<vmem>>, vector<256x256xbf16>
    %cst_24 = arith.constant dense<0.000000e+00> : vector<2x256xf32>
    %58 = tpu.matmul %56, %57, %cst_24 {dimension_numbers = #tpu.dot_dimension_numbers<[1], [0], [0], [1], [0, 0, 1, 1], [], []>} : vector<2x256xbf16>, vector<256x256xbf16>, vector<2x256xf32> -> vector<2x256xf32>
    %c0_25 = arith.constant 0 : index
    %c0_26 = arith.constant 0 : index
    %59 = vector.load %arg6[%c0_25, %c0_26] : memref<1x256xf32, #tpu.memory_space<vmem>>, vector<1x256xf32>
    %60 = vector.broadcast %59 : vector<1x256xf32> to vector<2x256xf32>
    %61 = arith.addf %58, %60 : vector<2x256xf32>
    %62 = vector.extract_strided_slice %61 {offsets = [0, 0], sizes = [2, 128], strides = [1, 1]} : vector<2x256xf32> to vector<2x128xf32>
    %63 = vector.extract_strided_slice %61 {offsets = [0, 128], sizes = [2, 128], strides = [1, 1]} : vector<2x256xf32> to vector<2x128xf32>
    %64 = arith.mulf %62, %63 : vector<2x128xf32>
    %65 = arith.mulf %62, %62 : vector<2x128xf32>
    %66 = arith.mulf %63, %63 : vector<2x128xf32>
    %67 = tpu.concatenate %64, %65, %66 in 0 : vector<2x128xf32>, vector<2x128xf32>, vector<2x128xf32> -> vector<6x128xf32>
    %cst_27 = arith.constant 1.000000e+00 : f32
    %68 = vector.broadcast %cst_27 : f32 to vector<1x128xf32>
    %cst_28 = arith.constant dense<0.000000e+00> : vector<1x6xf32>
    %69 = tpu.matmul %68, %67, %cst_28 {dimension_numbers = #tpu.dot_dimension_numbers<[1], [1], [0], [0], [0, 0, 1, 0], [], []>} : vector<1x128xf32>, vector<6x128xf32>, vector<1x6xf32> -> vector<1x6xf32>
    %70 = vector.extract_strided_slice %69 {offsets = [0, 0], sizes = [1, 2], strides = [1, 1]} : vector<1x6xf32> to vector<1x2xf32>
    %71 = vector.extract_strided_slice %69 {offsets = [0, 2], sizes = [1, 2], strides = [1, 1]} : vector<1x6xf32> to vector<1x2xf32>
    %72 = vector.extract_strided_slice %69 {offsets = [0, 4], sizes = [1, 2], strides = [1, 1]} : vector<1x6xf32> to vector<1x2xf32>
    %cst_29 = arith.constant 1.000000e-16 : f32
    %73 = vector.broadcast %cst_29 : f32 to vector<1x2xf32>
    %74 = arith.maximumf %71, %73 : vector<1x2xf32>
    %75 = math.rsqrt %74 : vector<1x2xf32>
    %cst_30 = arith.constant 1.000000e-16 : f32
    %76 = vector.broadcast %cst_30 : f32 to vector<1x2xf32>
    %77 = arith.maximumf %72, %76 : vector<1x2xf32>
    %78 = math.rsqrt %77 : vector<1x2xf32>
    %79 = arith.mulf %75, %78 : vector<1x2xf32>
    %80 = arith.mulf %70, %79 : vector<1x2xf32>
    %cst_31 = arith.constant 0.000000e+00 : f32
    %81 = vector.broadcast %cst_31 : f32 to vector<1x126xf32>
    %82 = tpu.concatenate %80, %81 in 1 : vector<1x2xf32>, vector<1x126xf32> -> vector<1x128xf32>
    %c0_32 = arith.constant 0 : index
    %c0_33 = arith.constant 0 : index
    %83 = vector.load %arg7[%c0_32, %c0_33] : memref<1x128xf32, #tpu.memory_space<vmem>>, vector<1x128xf32>
    tpu.vector_store %arg7[%c0_32, %c0_33], %82 {strides = array<i32>} : memref<1x128xf32, #tpu.memory_space<vmem>>, vector<1x128xf32>,
    return
  }
}

</mosaic_0001>

<llo_original>
// kernel: text_label_sim_forward.1
$region0: #{text_label_sim_forward.1}
  #allocation0 [shape = 'u32[]', space=smem, size = 0x4, offset = 0x4, fixed_abs, tag = 'smem constant byte address 0x4 - core index']
  #allocation1 [shape = 'u32[144,128]{1,0:T(1,128)}', space=vmem, size = 0x12000, scoped, tag = 'internal scratch']
  %s0 = inlined_call_operand.vmem [shape: s32[16,1], index: 0, kind: input, shape index: {}]
  %s1 = inlined_call_operand.vmem [shape: s32[16,1], index: 1, kind: input, shape index: {}]
  %s2 = inlined_call_operand.vmem [shape: bf16[256,256], index: 2, kind: input, shape index: {}]
  %s3 = inlined_call_operand.vmem [shape: bf16[256,256], index: 3, kind: input, shape index: {}]
  %s4 = inlined_call_operand.vmem [shape: f32[1,256], index: 4, kind: input, shape index: {}]
  %s5 = inlined_call_operand.vmem [shape: bf16[256,256], index: 5, kind: input, shape index: {}]
  %s6 = inlined_call_operand.vmem [shape: f32[1,256], index: 6, kind: input, shape index: {}]
  %s7 = inlined_call_operand.vmem [shape: f32[1,128], index: 7, kind: output, shape index: {}]
  %s8 = sld [smem:[#allocation0]]
  $region38: #{text_label_sim_forward.1} parent=0
    _
  %s10 = ssub.s32 1, %s8
  %s11 = scalar_select 0, %s10, %s8
  // Predicated region
  $region2: #{text_label_sim_forward.1} parent=0 // pred_check
    _
  $region3: #{text_label_sim_forward.1} parent=0 // pred_check_branch
    %13 = sbr.rel (0) target = $region5
  $region4: #{text_label_sim_forward.1} parent=0 // pred_region
    _
  $region5: #{text_label_sim_forward.1} parent=0 // pred_fallthru
    _
  // Predicated region
  $region6: #{text_label_sim_forward.1} parent=0 // pred_check
    _
  $region7: #{text_label_sim_forward.1} parent=0 // pred_check_branch
    %15 = sbr.rel (0) target = $region9
  $region8: #{text_label_sim_forward.1} parent=0 // pred_region
    _
  $region9: #{text_label_sim_forward.1} parent=0 // pred_fallthru
    _
  // Predicated region
  $region10: #{text_label_sim_forward.1} parent=0 // pred_check
    _
  $region11: #{text_label_sim_forward.1} parent=0 // pred_check_branch
    %17 = sbr.rel (0) target = $region13
  $region12: #{text_label_sim_forward.1} parent=0 // pred_region
    _
  $region13: #{text_label_sim_forward.1} parent=0 // pred_fallthru
    _
  // Predicated region
  $region14: #{text_label_sim_forward.1} parent=0 // pred_check
    _
  $region15: #{text_label_sim_forward.1} parent=0 // pred_check_branch
    %19 = sbr.rel (0) target = $region17
  $region16: #{text_label_sim_forward.1} parent=0 // pred_region
    _
  $region17: #{text_label_sim_forward.1} parent=0 // pred_fallthru
    _
  // Predicated region
  $region18: #{text_label_sim_forward.1} parent=0 // pred_check
    _
  $region19: #{text_label_sim_forward.1} parent=0 // pred_check_branch
    %21 = sbr.rel (0) target = $region21
  $region20: #{text_label_sim_forward.1} parent=0 // pred_region
    _
  $region21: #{text_label_sim_forward.1} parent=0 // pred_fallthru
    _
  // Predicated region
  $region22: #{text_label_sim_forward.1} parent=0 // pred_check
    _
  $region23: #{text_label_sim_forward.1} parent=0 // pred_check_branch
    %23 = sbr.rel (0) target = $region25
  $region24: #{text_label_sim_forward.1} parent=0 // pred_region
    _
  $region25: #{text_label_sim_forward.1} parent=0 // pred_fallthru
    _
  // Predicated region
  $region26: #{text_label_sim_forward.1} parent=0 // pred_check
    _
  $region27: #{text_label_sim_forward.1} parent=0 // pred_check_branch
    %25 = sbr.rel (0) target = $region29
  $region28: #{text_label_sim_forward.1} parent=0 // pred_region
    _
  $region29: #{text_label_sim_forward.1} parent=0 // pred_fallthru
    _
  %v26 = vld [vmem:[%s0] sm:$0xff]
  %v27 = vld [vmem:[%s0 + $0x8] sm:$0xff]
  %v28 = vlaneseq
  %v29 = vand.u32 %v28, 127
  %30 = vset.pattern.permute.xlu0 0
  %31 = vperm.xlu0 %30, %v26
  %v32 = vpop.permute.xlu0 %31
  %33 = vset.pattern.permute.xlu0 0
  %34 = vperm.xlu0 %33, %v27
  %v35 = vpop.permute.xlu0 %34
  %vm36 = vcmp.eq.s32.totalorder %v29, %v32
  %vm37 = vcmp.eq.s32.totalorder %v29, %v35
  %v38 = vsel %vm36, 1.0, 0.0
  %v39 = vsel %vm37, 1.0, 0.0
  %v40 = vrot.slane %v38, 4
  %v41 = vadd.f32 %v38, %v40
  %v42 = vrot.slane %v41, 2
  %v43 = vadd.f32 %v41, %v42
  %v44 = vrot.slane %v43, 1
  %v45 = vadd.f32 %v43, %v44
  %v46 = vrot.slane %v39, 4
  %v47 = vadd.f32 %v39, %v46
  %v48 = vrot.slane %v47, 2
  %v49 = vadd.f32 %v47, %v48
  %v50 = vrot.slane %v49, 1
  %v51 = vadd.f32 %v49, %v50
  %vm52 = vcmask 1040384
  %v53 = vsel %vm52, %v45, %v51
  %vm54 = vcmask 1041408
  %v55 = vsel %vm54, %v53, 0.0
  %56 = vadd.xlane.f32.xlu0 %v55
  %v57 = vpop.xlane.xlu0 %56
  %v58 = vld [vmem:[%s1] sm:$0xff]
  %v59 = vld [vmem:[%s1 + $0x8] sm:$0xff]
  %60 = vset.pattern.permute.xlu0 0
  %61 = vperm.xlu0 %60, %v58
  %v62 = vpop.permute.xlu0 %61
  %63 = vset.pattern.permute.xlu0 0
  %64 = vperm.xlu0 %63, %v59
  %v65 = vpop.permute.xlu0 %64
  %vm66 = vcmp.eq.s32.totalorder %v29, %v62
  %vm67 = vcmp.eq.s32.totalorder %v29, %v65
  %v68 = vsel %vm66, 1.0, 0.0
  %v69 = vsel %vm67, 1.0, 0.0
  %v70 = vrot.slane %v68, 4
  %v71 = vadd.f32 %v68, %v70
  %v72 = vrot.slane %v71, 2
  %v73 = vadd.f32 %v71, %v72
  %v74 = vrot.slane %v73, 1
  %v75 = vadd.f32 %v73, %v74
  %v76 = vrot.slane %v69, 4
  %v77 = vadd.f32 %v69, %v76
  %v78 = vrot.slane %v77, 2
  %v79 = vadd.f32 %v77, %v78
  %v80 = vrot.slane %v79, 1
  %v81 = vadd.f32 %v79, %v80
  %v82 = vsel %vm52, %v75, %v81
  %v83 = vsel %vm54, %v82, 0.0
  %84 = vadd.xlane.f32.xlu0 %v83
  %v85 = vpop.xlane.xlu0 %84
  %v86 = vpack.c.bf16 %v53, %v53
  %v87 = vpack.c.bf16 %v82, %v82
  %v88 = vld [vmem:[%s2] sm:$0xff]
  %v89 = vld [vmem:[%s2 + $0x8] sm:$0xff]
  %v90 = vld [vmem:[%s2 + $0x10] sm:$0xff]
  %v91 = vld [vmem:[%s2 + $0x18] sm:$0xff]
  %v92 = vld [vmem:[%s2 + $0x20] sm:$0xff]
  %v93 = vld [vmem:[%s2 + $0x28] sm:$0xff]
  %v94 = vld [vmem:[%s2 + $0x30] sm:$0xff]
  %v95 = vld [vmem:[%s2 + $0x38] sm:$0xff]
  %v96 = vld [vmem:[%s2 + $0x40] sm:$0xff]
  %v97 = vld [vmem:[%s2 + $0x48] sm:$0xff]
  %v98 = vld [vmem:[%s2 + $0x50] sm:$0xff]
  %v99 = vld [vmem:[%s2 + $0x58] sm:$0xff]
  %v100 = vld [vmem:[%s2 + $0x60] sm:$0xff]
  %v101 = vld [vmem:[%s2 + $0x68] sm:$0xff]
  %v102 = vld [vmem:[%s2 + $0x70] sm:$0xff]
  %v103 = vld [vmem:[%s2 + $0x78] sm:$0xff]
  %v104 = vld [vmem:[%s2 + $0x80] sm:$0xff]
  %v105 = vld [vmem:[%s2 + $0x88] sm:$0xff]
  %v106 = vld [vmem:[%s2 + $0x90] sm:$0xff]
  %v107 = vld [vmem:[%s2 + $0x98] sm:$0xff]
  %v108 = vld [vmem:[%s2 + $0xa0] sm:$0xff]
  %v109 = vld [vmem:[%s2 + $0xa8] sm:$0xff]
  %v110 = vld [vmem:[%s2 + $0xb0] sm:$0xff]
  %v111 = vld [vmem:[%s2 + $0xb8] sm:$0xff]
  %v112 = vld [vmem:[%s2 + $0xc0] sm:$0xff]
  %v113 = vld [vmem:[%s2 + $0xc8] sm:$0xff]
  %v114 = vld [vmem:[%s2 + $0xd0] sm:$0xff]
  %v115 = vld [vmem:[%s2 + $0xd8] sm:$0xff]
  %v116 = vld [vmem:[%s2 + $0xe0] sm:$0xff]
  %v117 = vld [vmem:[%s2 + $0xe8] sm:$0xff]
  %v118 = vld [vmem:[%s2 + $0xf0] sm:$0xff]
  %v119 = vld [vmem:[%s2 + $0xf8] sm:$0xff]
  %v152 = vunpack.c.l.b16 %v88
  %v153 = vunpack.c.h.b16 %v88
  %v154 = vunpack.c.l.b16 %v89
  %v155 = vunpack.c.h.b16 %v89
  %v156 = vunpack.c.l.b16 %v90
  %v157 = vunpack.c.h.b16 %v90
  %v158 = vunpack.c.l.b16 %v91
  %v159 = vunpack.c.h.b16 %v91
  %v160 = vunpack.c.l.b16 %v92
  %v161 = vunpack.c.h.b16 %v92
  %v162 = vunpack.c.l.b16 %v93
  %v163 = vunpack.c.h.b16 %v93
  %v164 = vunpack.c.l.b16 %v94
  %v165 = vunpack.c.h.b16 %v94
  %v166 = vunpack.c.l.b16 %v95
  %v167 = vunpack.c.h.b16 %v95
  %v168 = vunpack.c.l.b16 %v96
  %v169 = vunpack.c.h.b16 %v96
  %v170 = vunpack.c.l.b16 %v97
  %v171 = vunpack.c.h.b16 %v97
  %v172 = vunpack.c.l.b16 %v98
  %v173 = vunpack.c.h.b16 %v98
  %v174 = vunpack.c.l.b16 %v99
  %v175 = vunpack.c.h.b16 %v99
  %v176 = vunpack.c.l.b16 %v100
  %v177 = vunpack.c.h.b16 %v100
  %v178 = vunpack.c.l.b16 %v101
  %v179 = vunpack.c.h.b16 %v101
  %v180 = vunpack.c.l.b16 %v102
  %v181 = vunpack.c.h.b16 %v102
  %v182 = vunpack.c.l.b16 %v103
  %v183 = vunpack.c.h.b16 %v103
  %v184 = vunpack.c.l.b16 %v104
  %v185 = vunpack.c.h.b16 %v104
  %v186 = vunpack.c.l.b16 %v105
  %v187 = vunpack.c.h.b16 %v105
  %v188 = vunpack.c.l.b16 %v106
  %v189 = vunpack.c.h.b16 %v106
  %v190 = vunpack.c.l.b16 %v107
  %v191 = vunpack.c.h.b16 %v107
  %v192 = vunpack.c.l.b16 %v108
  %v193 = vunpack.c.h.b16 %v108
  %v194 = vunpack.c.l.b16 %v109
  %v195 = vunpack.c.h.b16 %v109
  %v196 = vunpack.c.l.b16 %v110
  %v197 = vunpack.c.h.b16 %v110
  %v198 = vunpack.c.l.b16 %v111
  %v199 = vunpack.c.h.b16 %v111
  %v200 = vunpack.c.l.b16 %v112
  %v201 = vunpack.c.h.b16 %v112
  %v202 = vunpack.c.l.b16 %v113
  %v203 = vunpack.c.h.b16 %v113
  %v204 = vunpack.c.l.b16 %v114
  %v205 = vunpack.c.h.b16 %v114
  %v206 = vunpack.c.l.b16 %v115
  %v207 = vunpack.c.h.b16 %v115
  %v208 = vunpack.c.l.b16 %v116
  %v209 = vunpack.c.h.b16 %v116
  %v210 = vunpack.c.l.b16 %v117
  %v211 = vunpack.c.h.b16 %v117
  %v212 = vunpack.c.l.b16 %v118
  %v213 = vunpack.c.h.b16 %v118
  %v214 = vunpack.c.l.b16 %v119
  %v215 = vunpack.c.h.b16 %v119
  %v216 = vpack.c.b16 %v154, %v152
  %v217 = vpack.c.b16 %v155, %v153
  %v218 = vpack.c.b16 %v158, %v156
  %v219 = vpack.c.b16 %v159, %v157
  %v220 = vpack.c.b16 %v162, %v160
  %v221 = vpack.c.b16 %v163, %v161
  %v222 = vpack.c.b16 %v166, %v164
  %v223 = vpack.c.b16 %v167, %v165
  %v224 = vpack.c.b16 %v170, %v168
  %v225 = vpack.c.b16 %v171, %v169
  %v226 = vpack.c.b16 %v174, %v172
  %v227 = vpack.c.b16 %v175, %v173
  %v228 = vpack.c.b16 %v178, %v176
  %v229 = vpack.c.b16 %v179, %v177
  %v230 = vpack.c.b16 %v182, %v180
  %v231 = vpack.c.b16 %v183, %v181
  %v232 = vpack.c.b16 %v186, %v184
  %v233 = vpack.c.b16 %v187, %v185
  %v234 = vpack.c.b16 %v190, %v188
  %v235 = vpack.c.b16 %v191, %v189
  %v236 = vpack.c.b16 %v194, %v192
  %v237 = vpack.c.b16 %v195, %v193
  %v238 = vpack.c.b16 %v198, %v196
  %v239 = vpack.c.b16 %v199, %v197
  %v240 = vpack.c.b16 %v202, %v200
  %v241 = vpack.c.b16 %v203, %v201
  %v242 = vpack.c.b16 %v206, %v204
  %v243 = vpack.c.b16 %v207, %v205
  %v244 = vpack.c.b16 %v210, %v208
  %v245 = vpack.c.b16 %v211, %v209
  %v246 = vpack.c.b16 %v214, %v212
  %v247 = vpack.c.b16 %v215, %v213
  %280 = vmatprep.subr.bf16.mxu0 %v217
  %281 = vmatpush1.bf16.msra.mxu0 %v216
  %282 = vmatprep.subr.bf16.mxu0 %v219
  %283 = vmatpush1.bf16.msra.mxu0 %v218
  %284 = vmatprep.subr.bf16.mxu0 %v221
  %285 = vmatpush1.bf16.msra.mxu0 %v220
  %286 = vmatprep.subr.bf16.mxu0 %v223
  %287 = vmatpush1.bf16.msra.mxu0 %v222
  %288 = vmatprep.subr.bf16.mxu0 %v225
  %289 = vmatpush1.bf16.msra.mxu0 %v224
  %290 = vmatprep.subr.bf16.mxu0 %v227
  %291 = vmatpush1.bf16.msra.mxu0 %v226
  %292 = vmatprep.subr.bf16.mxu0 %v229
  %293 = vmatpush1.bf16.msra.mxu0 %v228
  %294 = vmatprep.subr.bf16.mxu0 %v231
  %295 = vmatpush1.bf16.msra.mxu0 %v230
  %296 = vmatprep.subr.bf16.mxu0 %v233
  %297 = vmatpush1.bf16.msra.mxu0 %v232
  %298 = vmatprep.subr.bf16.mxu0 %v235
  %299 = vmatpush1.bf16.msra.mxu0 %v234
  %300 = vmatprep.subr.bf16.mxu0 %v237
  %301 = vmatpush1.bf16.msra.mxu0 %v236
  %302 = vmatprep.subr.bf16.mxu0 %v239
  %303 = vmatpush1.bf16.msra.mxu0 %v238
  %304 = vmatprep.subr.bf16.mxu0 %v241
  %305 = vmatpush1.bf16.msra.mxu0 %v240
  %306 = vmatprep.subr.bf16.mxu0 %v243
  %307 = vmatpush1.bf16.msra.mxu0 %v242
  %308 = vmatprep.subr.bf16.mxu0 %v245
  %309 = vmatpush1.bf16.msra.mxu0 %v244
  %310 = vmatprep.subr.bf16.mxu0 %v247
  %311 = vmatpush1.bf16.msra.mxu0 %v246
  %312 = vmatprep.mubr.bf16.mxu0 %v87
  %313 = vmatmul.mubr.bf16.gmra.mrb[0].mxu0 %v86
  %v314 = vpop.f32.mrb[0].mxu0
  %v315 = vadd.f32 0.0, %v314
  %v316 = vpop.f32.mrb[0].mxu0
  %v317 = vadd.f32 0.0, %v316
  %v318 = vpop.f32.mrb[0].mxu0
  %v319 = vpop.f32.mrb[0].mxu0
  %320 = vdwg.mxu0
  %v321 = vadd.s32 %v29, 128
  %vm322 = vcmp.lt.s32.totalorder %v29, 128
  %vm323 = vcmp.lt.s32.totalorder %v321, 128
  %v324 = vmax.f32 %v57, 1e-09
  %v325 = vmax.f32 %v85, 1e-09
  %v326 = vsel %vm322, %v324, %v325
  %v327 = vsel %vm323, %v324, %v325
  %v328 = vrcp.pop %v326
  %v329 = vmul.f32 %v315, %v328
  %v330 = vrcp.pop %v327
  %v331 = vmul.f32 %v317, %v330
  %v332 = vpack.c.bf16 %v329, %v329
  %v333 = vpack.c.bf16 %v331, %v331
  %v334 = vld [vmem:[%s3] sm:$0xff]
  %v335 = vld [vmem:[%s3 + $0x8] sm:$0xff]
  %v336 = vld [vmem:[%s3 + $0x10] sm:$0xff]
  %v337 = vld [vmem:[%s3 + $0x18] sm:$0xff]
  %v338 = vld [vmem:[%s3 + $0x20] sm:$0xff]
  %v339 = vld [vmem:[%s3 + $0x28] sm:$0xff]
  %v340 = vld [vmem:[%s3 + $0x30] sm:$0xff]
  %v341 = vld [vmem:[%s3 + $0x38] sm:$0xff]
  %v342 = vld [vmem:[%s3 + $0x40] sm:$0xff]
  %v343 = vld [vmem:[%s3 + $0x48] sm:$0xff]
  %v344 = vld [vmem:[%s3 + $0x50] sm:$0xff]
  %v345 = vld [vmem:[%s3 + $0x58] sm:$0xff]
  %v346 = vld [vmem:[%s3 + $0x60] sm:$0xff]
  %v347 = vld [vmem:[%s3 + $0x68] sm:$0xff]
  %v348 = vld [vmem:[%s3 + $0x70] sm:$0xff]
  %v349 = vld [vmem:[%s3 + $0x78] sm:$0xff]
  %v350 = vld [vmem:[%s3 + $0x80] sm:$0xff]
  %v351 = vld [vmem:[%s3 + $0x88] sm:$0xff]
  %v352 = vld [vmem:[%s3 + $0x90] sm:$0xff]
  %v353 = vld [vmem:[%s3 + $0x98] sm:$0xff]
  %v354 = vld [vmem:[%s3 + $0xa0] sm:$0xff]
  %v355 = vld [vmem:[%s3 + $0xa8] sm:$0xff]
  %v356 = vld [vmem:[%s3 + $0xb0] sm:$0xff]
  %v357 = vld [vmem:[%s3 + $0xb8] sm:$0xff]
  %v358 = vld [vmem:[%s3 + $0xc0] sm:$0xff]
  %v359 = vld [vmem:[%s3 + $0xc8] sm:$0xff]
  %v360 = vld [vmem:[%s3 + $0xd0] sm:$0xff]
  %v361 = vld [vmem:[%s3 + $0xd8] sm:$0xff]
  %v362 = vld [vmem:[%s3 + $0xe0] sm:$0xff]
  %v363 = vld [vmem:[%s3 + $0xe8] sm:$0xff]
  %v364 = vld [vmem:[%s3 + $0xf0] sm:$0xff]
  %v365 = vld [vmem:[%s3 + $0xf8] sm:$0xff]
  %v366 = vld [vmem:[%s4] sm:$0x3]
  %v368 = vlaneseq
  %v369 = vshrl.u32 %v368, 7
  %v370 = vsub.s32 0, %v369
  %v371 = vrot.slane %v366, %v370
  %v372 = vlaneseq
  %v373 = vshrl.u32 %v372, 7
  %v374 = vsub.s32 1, %v373
  %v375 = vrot.slane %v366, %v374
  %v410 = vunpack.c.l.b16 %v334
  %v411 = vunpack.c.h.b16 %v334
  %v412 = vunpack.c.l.b16 %v335
  %v413 = vunpack.c.h.b16 %v335
  %v414 = vunpack.c.l.b16 %v336
  %v415 = vunpack.c.h.b16 %v336
  %v416 = vunpack.c.l.b16 %v337
  %v417 = vunpack.c.h.b16 %v337
  %v418 = vunpack.c.l.b16 %v338
  %v419 = vunpack.c.h.b16 %v338
  %v420 = vunpack.c.l.b16 %v339
  %v421 = vunpack.c.h.b16 %v339
  %v422 = vunpack.c.l.b16 %v340
  %v423 = vunpack.c.h.b16 %v340
  %v424 = vunpack.c.l.b16 %v341
  %v425 = vunpack.c.h.b16 %v341
  %v426 = vunpack.c.l.b16 %v342
  %v427 = vunpack.c.h.b16 %v342
  %v428 = vunpack.c.l.b16 %v343
  %v429 = vunpack.c.h.b16 %v343
  %v430 = vunpack.c.l.b16 %v344
  %v431 = vunpack.c.h.b16 %v344
  %v432 = vunpack.c.l.b16 %v345
  %v433 = vunpack.c.h.b16 %v345
  %v434 = vunpack.c.l.b16 %v346
  %v435 = vunpack.c.h.b16 %v346
  %v436 = vunpack.c.l.b16 %v347
  %v437 = vunpack.c.h.b16 %v347
  %v438 = vunpack.c.l.b16 %v348
  %v439 = vunpack.c.h.b16 %v348
  %v440 = vunpack.c.l.b16 %v349
  %v441 = vunpack.c.h.b16 %v349
  %v442 = vunpack.c.l.b16 %v350
  %v443 = vunpack.c.h.b16 %v350
  %v444 = vunpack.c.l.b16 %v351
  %v445 = vunpack.c.h.b16 %v351
  %v446 = vunpack.c.l.b16 %v352
  %v447 = vunpack.c.h.b16 %v352
  %v448 = vunpack.c.l.b16 %v353
  %v449 = vunpack.c.h.b16 %v353
  %v450 = vunpack.c.l.b16 %v354
  %v451 = vunpack.c.h.b16 %v354
  %v452 = vunpack.c.l.b16 %v355
  %v453 = vunpack.c.h.b16 %v355
  %v454 = vunpack.c.l.b16 %v356
  %v455 = vunpack.c.h.b16 %v356
  %v456 = vunpack.c.l.b16 %v357
  %v457 = vunpack.c.h.b16 %v357
  %v458 = vunpack.c.l.b16 %v358
  %v459 = vunpack.c.h.b16 %v358
  %v460 = vunpack.c.l.b16 %v359
  %v461 = vunpack.c.h.b16 %v359
  %v462 = vunpack.c.l.b16 %v360
  %v463 = vunpack.c.h.b16 %v360
  %v464 = vunpack.c.l.b16 %v361
  %v465 = vunpack.c.h.b16 %v361
  %v466 = vunpack.c.l.b16 %v362
  %v467 = vunpack.c.h.b16 %v362
  %v468 = vunpack.c.l.b16 %v363
  %v469 = vunpack.c.h.b16 %v363
  %v470 = vunpack.c.l.b16 %v364
  %v471 = vunpack.c.h.b16 %v364
  %v472 = vunpack.c.l.b16 %v365
  %v473 = vunpack.c.h.b16 %v365
  %v474 = vpack.c.b16 %v412, %v410
  %v475 = vpack.c.b16 %v413, %v411
  %v476 = vpack.c.b16 %v416, %v414
  %v477 = vpack.c.b16 %v417, %v415
  %v478 = vpack.c.b16 %v420, %v418
  %v479 = vpack.c.b16 %v421, %v419
  %v480 = vpack.c.b16 %v424, %v422
  %v481 = vpack.c.b16 %v425, %v423
  %v482 = vpack.c.b16 %v428, %v426
  %v483 = vpack.c.b16 %v429, %v427
  %v484 = vpack.c.b16 %v432, %v430
  %v485 = vpack.c.b16 %v433, %v431
  %v486 = vpack.c.b16 %v436, %v434
  %v487 = vpack.c.b16 %v437, %v435
  %v488 = vpack.c.b16 %v440, %v438
  %v489 = vpack.c.b16 %v441, %v439
  %v490 = vpack.c.b16 %v444, %v442
  %v491 = vpack.c.b16 %v445, %v443
  %v492 = vpack.c.b16 %v448, %v446
  %v493 = vpack.c.b16 %v449, %v447
  %v494 = vpack.c.b16 %v452, %v450
  %v495 = vpack.c.b16 %v453, %v451
  %v496 = vpack.c.b16 %v456, %v454
  %v497 = vpack.c.b16 %v457, %v455
  %v498 = vpack.c.b16 %v460, %v458
  %v499 = vpack.c.b16 %v461, %v459
  %v500 = vpack.c.b16 %v464, %v462
  %v501 = vpack.c.b16 %v465, %v463
  %v502 = vpack.c.b16 %v468, %v466
  %v503 = vpack.c.b16 %v469, %v467
  %v504 = vpack.c.b16 %v472, %v470
  %v505 = vpack.c.b16 %v473, %v471
  %538 = vmatprep.subr.bf16.mxu0 %v475
  %539 = vmatpush1.bf16.msra.mxu0 %v474
  %540 = vmatprep.subr.bf16.mxu0 %v477
  %541 = vmatpush1.bf16.msra.mxu0 %v476
  %542 = vmatprep.subr.bf16.mxu0 %v479
  %543 = vmatpush1.bf16.msra.mxu0 %v478
  %544 = vmatprep.subr.bf16.mxu0 %v481
  %545 = vmatpush1.bf16.msra.mxu0 %v480
  %546 = vmatprep.subr.bf16.mxu0 %v483
  %547 = vmatpush1.bf16.msra.mxu0 %v482
  %548 = vmatprep.subr.bf16.mxu0 %v485
  %549 = vmatpush1.bf16.msra.mxu0 %v484
  %550 = vmatprep.subr.bf16.mxu0 %v487
  %551 = vmatpush1.bf16.msra.mxu0 %v486
  %552 = vmatprep.subr.bf16.mxu0 %v489
  %553 = vmatpush1.bf16.msra.mxu0 %v488
  %554 = vmatprep.subr.bf16.mxu0 %v491
  %555 = vmatpush1.bf16.msra.mxu0 %v490
  %556 = vmatprep.subr.bf16.mxu0 %v493
  %557 = vmatpush1.bf16.msra.mxu0 %v492
  %558 = vmatprep.subr.bf16.mxu0 %v495
  %559 = vmatpush1.bf16.msra.mxu0 %v494
  %560 = vmatprep.subr.bf16.mxu0 %v497
  %561 = vmatpush1.bf16.msra.mxu0 %v496
  %562 = vmatprep.subr.bf16.mxu0 %v499
  %563 = vmatpush1.bf16.msra.mxu0 %v498
  %564 = vmatprep.subr.bf16.mxu0 %v501
  %565 = vmatpush1.bf16.msra.mxu0 %v500
  %566 = vmatprep.subr.bf16.mxu0 %v503
  %567 = vmatpush1.bf16.msra.mxu0 %v502
  %568 = vmatprep.subr.bf16.mxu0 %v505
  %569 = vmatpush1.bf16.msra.mxu0 %v504
  %570 = vmatprep.mubr.bf16.mxu0 %v333
  %571 = vmatmul.mubr.bf16.gmra.mrb[0].mxu0 %v332
  %v572 = vpop.f32.mrb[0].mxu0
  %v573 = vadd.f32 %v371, %v572
  %v574 = vpop.f32.mrb[0].mxu0
  %v575 = vadd.f32 %v375, %v574
  %v576 = vpop.f32.mrb[0].mxu0
  %v577 = vpop.f32.mrb[0].mxu0
  %578 = vdwg.mxu0
  %v579 = vtanh.pop %v573
  %v580 = vtanh.pop %v575
  %v581 = vpack.c.bf16 %v579, %v579
  %v582 = vpack.c.bf16 %v580, %v580
  %v583 = vld [vmem:[%s5] sm:$0xff]
  %v584 = vld [vmem:[%s5 + $0x8] sm:$0xff]
  %v585 = vld [vmem:[%s5 + $0x10] sm:$0xff]
  %v586 = vld [vmem:[%s5 + $0x18] sm:$0xff]
  %v587 = vld [vmem:[%s5 + $0x20] sm:$0xff]
  %v588 = vld [vmem:[%s5 + $0x28] sm:$0xff]
  %v589 = vld [vmem:[%s5 + $0x30] sm:$0xff]
  %v590 = vld [vmem:[%s5 + $0x38] sm:$0xff]
  %v591 = vld [vmem:[%s5 + $0x40] sm:$0xff]
  %v592 = vld [vmem:[%s5 + $0x48] sm:$0xff]
  %v593 = vld [vmem:[%s5 + $0x50] sm:$0xff]
  %v594 = vld [vmem:[%s5 + $0x58] sm:$0xff]
  %v595 = vld [vmem:[%s5 + $0x60] sm:$0xff]
  %v596 = vld [vmem:[%s5 + $0x68] sm:$0xff]
  %v597 = vld [vmem:[%s5 + $0x70] sm:$0xff]
  %v598 = vld [vmem:[%s5 + $0x78] sm:$0xff]
  %v599 = vld [vmem:[%s5 + $0x80] sm:$0xff]
  %v600 = vld [vmem:[%s5 + $0x88] sm:$0xff]
  %v601 = vld [vmem:[%s5 + $0x90] sm:$0xff]
  %v602 = vld [vmem:[%s5 + $0x98] sm:$0xff]
  %v603 = vld [vmem:[%s5 + $0xa0] sm:$0xff]
  %v604 = vld [vmem:[%s5 + $0xa8] sm:$0xff]
  %v605 = vld [vmem:[%s5 + $0xb0] sm:$0xff]
  %v606 = vld [vmem:[%s5 + $0xb8] sm:$0xff]
  %v607 = vld [vmem:[%s5 + $0xc0] sm:$0xff]
  %v608 = vld [vmem:[%s5 + $0xc8] sm:$0xff]
  %v609 = vld [vmem:[%s5 + $0xd0] sm:$0xff]
  %v610 = vld [vmem:[%s5 + $0xd8] sm:$0xff]
  %v611 = vld [vmem:[%s5 + $0xe0] sm:$0xff]
  %v612 = vld [vmem:[%s5 + $0xe8] sm:$0xff]
  %v613 = vld [vmem:[%s5 + $0xf0] sm:$0xff]
  %v614 = vld [vmem:[%s5 + $0xf8] sm:$0xff]
  %v615 = vld [vmem:[%s6] sm:$0x3]
  %v617 = vlaneseq
  %v618 = vshrl.u32 %v617, 7
  %v619 = vsub.s32 0, %v618
  %v620 = vrot.slane %v615, %v619
  %v621 = vlaneseq
  %v622 = vshrl.u32 %v621, 7
  %v623 = vsub.s32 1, %v622
  %v624 = vrot.slane %v615, %v623
  %v659 = vunpack.c.l.b16 %v583
  %v660 = vunpack.c.h.b16 %v583
  %v661 = vunpack.c.l.b16 %v584
  %v662 = vunpack.c.h.b16 %v584
  %v663 = vunpack.c.l.b16 %v585
  %v664 = vunpack.c.h.b16 %v585
  %v665 = vunpack.c.l.b16 %v586
  %v666 = vunpack.c.h.b16 %v586
  %v667 = vunpack.c.l.b16 %v587
  %v668 = vunpack.c.h.b16 %v587
  %v669 = vunpack.c.l.b16 %v588
  %v670 = vunpack.c.h.b16 %v588
  %v671 = vunpack.c.l.b16 %v589
  %v672 = vunpack.c.h.b16 %v589
  %v673 = vunpack.c.l.b16 %v590
  %v674 = vunpack.c.h.b16 %v590
  %v675 = vunpack.c.l.b16 %v591
  %v676 = vunpack.c.h.b16 %v591
  %v677 = vunpack.c.l.b16 %v592
  %v678 = vunpack.c.h.b16 %v592
  %v679 = vunpack.c.l.b16 %v593
  %v680 = vunpack.c.h.b16 %v593
  %v681 = vunpack.c.l.b16 %v594
  %v682 = vunpack.c.h.b16 %v594
  %v683 = vunpack.c.l.b16 %v595
  %v684 = vunpack.c.h.b16 %v595
  %v685 = vunpack.c.l.b16 %v596
  %v686 = vunpack.c.h.b16 %v596
  %v687 = vunpack.c.l.b16 %v597
  %v688 = vunpack.c.h.b16 %v597
  %v689 = vunpack.c.l.b16 %v598
  %v690 = vunpack.c.h.b16 %v598
  %v691 = vunpack.c.l.b16 %v599
  %v692 = vunpack.c.h.b16 %v599
  %v693 = vunpack.c.l.b16 %v600
  %v694 = vunpack.c.h.b16 %v600
  %v695 = vunpack.c.l.b16 %v601
  %v696 = vunpack.c.h.b16 %v601
  %v697 = vunpack.c.l.b16 %v602
  %v698 = vunpack.c.h.b16 %v602
  %v699 = vunpack.c.l.b16 %v603
  %v700 = vunpack.c.h.b16 %v603
  %v701 = vunpack.c.l.b16 %v604
  %v702 = vunpack.c.h.b16 %v604
  %v703 = vunpack.c.l.b16 %v605
  %v704 = vunpack.c.h.b16 %v605
  %v705 = vunpack.c.l.b16 %v606
  %v706 = vunpack.c.h.b16 %v606
  %v707 = vunpack.c.l.b16 %v607
  %v708 = vunpack.c.h.b16 %v607
  %v709 = vunpack.c.l.b16 %v608
  %v710 = vunpack.c.h.b16 %v608
  %v711 = vunpack.c.l.b16 %v609
  %v712 = vunpack.c.h.b16 %v609
  %v713 = vunpack.c.l.b16 %v610
  %v714 = vunpack.c.h.b16 %v610
  %v715 = vunpack.c.l.b16 %v611
  %v716 = vunpack.c.h.b16 %v611
  %v717 = vunpack.c.l.b16 %v612
  %v718 = vunpack.c.h.b16 %v612
  %v719 = vunpack.c.l.b16 %v613
  %v720 = vunpack.c.h.b16 %v613
  %v721 = vunpack.c.l.b16 %v614
  %v722 = vunpack.c.h.b16 %v614
  %v723 = vpack.c.b16 %v661, %v659
  %v724 = vpack.c.b16 %v662, %v660
  %v725 = vpack.c.b16 %v665, %v663
  %v726 = vpack.c.b16 %v666, %v664
  %v727 = vpack.c.b16 %v669, %v667
  %v728 = vpack.c.b16 %v670, %v668
  %v729 = vpack.c.b16 %v673, %v671
  %v730 = vpack.c.b16 %v674, %v672
  %v731 = vpack.c.b16 %v677, %v675
  %v732 = vpack.c.b16 %v678, %v676
  %v733 = vpack.c.b16 %v681, %v679
  %v734 = vpack.c.b16 %v682, %v680
  %v735 = vpack.c.b16 %v685, %v683
  %v736 = vpack.c.b16 %v686, %v684
  %v737 = vpack.c.b16 %v689, %v687
  %v738 = vpack.c.b16 %v690, %v688
  %v739 = vpack.c.b16 %v693, %v691
  %v740 = vpack.c.b16 %v694, %v692
  %v741 = vpack.c.b16 %v697, %v695
  %v742 = vpack.c.b16 %v698, %v696
  %v743 = vpack.c.b16 %v701, %v699
  %v744 = vpack.c.b16 %v702, %v700
  %v745 = vpack.c.b16 %v705, %v703
  %v746 = vpack.c.b16 %v706, %v704
  %v747 = vpack.c.b16 %v709, %v707
  %v748 = vpack.c.b16 %v710, %v708
  %v749 = vpack.c.b16 %v713, %v711
  %v750 = vpack.c.b16 %v714, %v712
  %v751 = vpack.c.b16 %v717, %v715
  %v752 = vpack.c.b16 %v718, %v716
  %v753 = vpack.c.b16 %v721, %v719
  %v754 = vpack.c.b16 %v722, %v720
  %787 = vmatprep.subr.bf16.mxu0 %v724
  %788 = vmatpush1.bf16.msra.mxu0 %v723
  %789 = vmatprep.subr.bf16.mxu0 %v726
  %790 = vmatpush1.bf16.msra.mxu0 %v725
  %791 = vmatprep.subr.bf16.mxu0 %v728
  %792 = vmatpush1.bf16.msra.mxu0 %v727
  %793 = vmatprep.subr.bf16.mxu0 %v730
  %794 = vmatpush1.bf16.msra.mxu0 %v729
  %795 = vmatprep.subr.bf16.mxu0 %v732
  %796 = vmatpush1.bf16.msra.mxu0 %v731
  %797 = vmatprep.subr.bf16.mxu0 %v734
  %798 = vmatpush1.bf16.msra.mxu0 %v733
  %799 = vmatprep.subr.bf16.mxu0 %v736
  %800 = vmatpush1.bf16.msra.mxu0 %v735
  %801 = vmatprep.subr.bf16.mxu0 %v738
  %802 = vmatpush1.bf16.msra.mxu0 %v737
  %803 = vmatprep.subr.bf16.mxu0 %v740
  %804 = vmatpush1.bf16.msra.mxu0 %v739
  %805 = vmatprep.subr.bf16.mxu0 %v742
  %806 = vmatpush1.bf16.msra.mxu0 %v741
  %807 = vmatprep.subr.bf16.mxu0 %v744
  %808 = vmatpush1.bf16.msra.mxu0 %v743
  %809 = vmatprep.subr.bf16.mxu0 %v746
  %810 = vmatpush1.bf16.msra.mxu0 %v745
  %811 = vmatprep.subr.bf16.mxu0 %v748
  %812 = vmatpush1.bf16.msra.mxu0 %v747
  %813 = vmatprep.subr.bf16.mxu0 %v750
  %814 = vmatpush1.bf16.msra.mxu0 %v749
  %815 = vmatprep.subr.bf16.mxu0 %v752
  %816 = vmatpush1.bf16.msra.mxu0 %v751
  %817 = vmatprep.subr.bf16.mxu0 %v754
  %818 = vmatpush1.bf16.msra.mxu0 %v753
  %819 = vmatprep.mubr.bf16.mxu0 %v582
  %820 = vmatmul.mubr.bf16.gmra.mrb[0].mxu0 %v581
  %v821 = vpop.f32.mrb[0].mxu0
  %v822 = vadd.f32 %v620, %v821
  %v823 = vpop.f32.mrb[0].mxu0
  %v824 = vadd.f32 %v624, %v823
  %v825 = vpop.f32.mrb[0].mxu0
  %v826 = vpop.f32.mrb[0].mxu0
  %827 = vdwg.mxu0
  %v828 = vmul.f32 %v822, %v824
  %v829 = vmul.f32 %v822, %v822
  %v830 = vmul.f32 %v824, %v824
  %v832 = vrot.slane %v829, 6
  %v835 = vrot.slane %v830, 4
  %v837 = vsel %vm54, %v828, %v832
  %vm838 = vcmask 1043456
  %v839 = vsel %vm838, %v837, %v835
  %840 = vmatprep.subr.mxu0 0.0
  %841 = vmatpush1.xpose.msra.mxu0 %v839
  %842 = vmatprep.subr.mxu0 0.0
  %843 = vmatpush1.xpose.msra.mxu0 0.0
  %844 = vmatprep.subr.mxu0 0.0
  %845 = vmatpush1.xpose.msra.mxu0 0.0
  %846 = vmatprep.subr.mxu0 0.0
  %847 = vmatpush1.xpose.msra.mxu0 0.0
  %848 = vmatprep.subr.mxu0 0.0
  %849 = vmatpush1.xpose.msra.mxu0 0.0
  %850 = vmatprep.subr.mxu0 0.0
  %851 = vmatpush1.xpose.msra.mxu0 0.0
  %852 = vmatprep.subr.mxu0 0.0
  %853 = vmatpush1.xpose.msra.mxu0 0.0
  %854 = vmatprep.subr.mxu0 0.0
  %855 = vmatpush1.xpose.msra.mxu0 0.0
  %856 = vmatprep.subr.mxu0 0.0
  %857 = vmatpush1.xpose.msra.mxu0 0.0
  %858 = vmatprep.subr.mxu0 0.0
  %859 = vmatpush1.xpose.msra.mxu0 0.0
  %860 = vmatprep.subr.mxu0 0.0
  %861 = vmatpush1.xpose.msra.mxu0 0.0
  %862 = vmatprep.subr.mxu0 0.0
  %863 = vmatpush1.xpose.msra.mxu0 0.0
  %864 = vmatprep.subr.mxu0 0.0
  %865 = vmatpush1.xpose.msra.mxu0 0.0
  %866 = vmatprep.subr.mxu0 0.0
  %867 = vmatpush1.xpose.msra.mxu0 0.0
  %868 = vmatprep.subr.mxu0 0.0
  %869 = vmatpush1.xpose.msra.mxu0 0.0
  %870 = vmatprep.subr.mxu0 0.0
  %871 = vmatpush1.xpose.msra.mxu0 0.0
  %872 = vmatprep.subr.mxu0 0.0
  %873 = vmatpush1.xpose.msra.mxu0 0.0
  %874 = vmatprep.subr.mxu0 0.0
  %875 = vmatpush1.xpose.msra.mxu0 0.0
  %876 = vmatprep.subr.mxu0 0.0
  %877 = vmatpush1.xpose.msra.mxu0 0.0
  %878 = vmatprep.subr.mxu0 0.0
  %879 = vmatpush1.xpose.msra.mxu0 0.0
  %880 = vmatprep.subr.mxu0 0.0
  %881 = vmatpush1.xpose.msra.mxu0 0.0
  %882 = vmatprep.subr.mxu0 0.0
  %883 = vmatpush1.xpose.msra.mxu0 0.0
  %884 = vmatprep.subr.mxu0 0.0
  %885 = vmatpush1.xpose.msra.mxu0 0.0
  %886 = vmatprep.subr.mxu0 0.0
  %887 = vmatpush1.xpose.msra.mxu0 0.0
  %888 = vmatprep.subr.mxu0 0.0
  %889 = vmatpush1.xpose.msra.mxu0 0.0
  %890 = vmatprep.subr.mxu0 0.0
  %891 = vmatpush1.xpose.msra.mxu0 0.0
  %892 = vmatprep.subr.mxu0 0.0
  %893 = vmatpush1.xpose.msra.mxu0 0.0
  %894 = vmatprep.subr.mxu0 0.0
  %895 = vmatpush1.xpose.msra.mxu0 0.0
  %896 = vmatprep.subr.mxu0 0.0
  %897 = vmatpush1.xpose.msra.mxu0 0.0
  %898 = vmatprep.subr.mxu0 0.0
  %899 = vmatpush1.xpose.msra.mxu0 0.0
  %900 = vmatprep.subr.mxu0 0.0
  %901 = vmatpush1.xpose.msra.mxu0 0.0
  %902 = vmatprep.subr.mxu0 0.0
  %903 = vmatpush1.xpose.msra.mxu0 0.0
  %904 = vmatprep.mubr.f32.mxu0 0.0
  %905 = vmatmul.mubr.f32.gmra.mrb[0].mxu0 1.0
  %v906 = vpop.f32.mrb[0].mxu0
  %v907 = vadd.f32 0.0, %v906
  %v908 = vpop.f32.mrb[0].mxu0
  %909 = vdwg.mxu0
  %v910 = vmax.f32 %v907, 1e-16
  %v911 = vrsqrt.pop %v910
  %913 = vrot.lane.b32.xlu0 %v911, 126
  %v914 = vpop.permute.xlu0 %913
  %v916 = vmul.f32 %v911, %v914
  %918 = vrot.lane.b32.xlu0 %v916, 126
  %v919 = vpop.permute.xlu0 %918
  %v921 = vmul.f32 %v907, %v919
  %vm922 = vcmask 15360
  %v923 = vsel %vm922, %v921, 0.0
  %924 = vst [vmem:[%s7] sm:$0x1] %v923
  // Predicated region
  $region30: #{text_label_sim_forward.1} parent=0 // pred_check
    _
  $region31: #{text_label_sim_forward.1} parent=0 // pred_check_branch
    %926 = sbr.rel (0) target = $region33
  $region32: #{text_label_sim_forward.1} parent=0 // pred_region
    _
  $region33: #{text_label_sim_forward.1} parent=0 // pred_fallthru
    _
  // Predicated region
  $region34: #{text_label_sim_forward.1} parent=0 // pred_check
    _
  $region35: #{text_label_sim_forward.1} parent=0 // pred_check_branch
    %928 = sbr.rel (0) target = $region37
  $region36: #{text_label_sim_forward.1} parent=0 // pred_region
    _
  $region37: #{text_label_sim_forward.1} parent=0 // pred_fallthru
    _

</llo_original>
